<compile_context>
chip_gen: v7x
topology: tpu7x:2x2x1
jax: 0.10.0
libtpu: 0.0.40
codegen_flags: <defaults>
</compile_context>

<pallas_src>
import functools

import jax
import jax.numpy as jnp
import numpy as np
from jax.experimental import pallas as pl
from jax.experimental.pallas import tpu as pltpu

LANE = 128      # lane width (last-dim tiling)
SUBLANE = 8     # sublane width (second-to-last-dim tiling)


def _round_up(x, m):
    return (x + m - 1) // m * m


# --------------------------------------------------------------------------
# Kernel
# --------------------------------------------------------------------------
def mapping_kernel(z_ref, w_ref, b_ref, o_ref, *, true_dim_in, n_layers, slope):
    """One batch tile: pixel-norm + n_layers x (bf16 dense + f32 leaky-relu)."""
    z = z_ref[...].astype(jnp.float32)                       # (TM, D_pad)

    # PixelNormLayer: x * rsqrt(mean(x^2, feature) + 1e-8).
    # Padded lanes are exactly zero so they don't change the sum, but the
    # divisor must be the TRUE feature count, not the padded lane width.
    ss = jnp.sum(z * z, axis=-1, keepdims=True) * (1.0 / true_dim_in)
    h = z * jax.lax.rsqrt(ss + 1e-8)

    # Chain of EqualizedLinear + LeakyReLU(0.2).  Weights are pre-scaled
    # (wscale * lrmul) in the wrapper and stored in bf16; matmuls run with
    # bf16 operands and f32 accumulation on the MXU.
    for l in range(n_layers):                                # static unroll
        y = jnp.dot(h.astype(jnp.bfloat16), w_ref[l],
                    preferred_element_type=jnp.float32)      # (TM, D_pad) f32
        y = y + b_ref[l]                                     # (1, D_pad) broadcast
        h = jnp.maximum(y, slope * y)                        # leaky-relu, f32

    o_ref[...] = h.astype(o_ref.dtype)


# --------------------------------------------------------------------------
# Parameter init (reproduces EqualizedLinear(use_wscale=True, lrmul=0.01))
# --------------------------------------------------------------------------
def init_mapping_params(key, dim_in, dim_out, nf=128, mapping_layers=4,
                        gain=np.sqrt(2.0), lrmul=0.01):
    dims = [dim_in] + [nf] * (mapping_layers - 1) + [dim_out]
    params = []
    init_std = 1.0 / lrmul
    for i in range(mapping_layers):
        fan_in, fan_out = dims[i], dims[i + 1]
        key, wk = jax.random.split(key)
        raw_w = jax.random.normal(wk, (fan_out, fan_in), jnp.float32) * init_std
        w_mul = (gain / np.sqrt(fan_in)) * lrmul              # he_std * lrmul
        eff_w = (raw_w * w_mul).T                             # (fan_in, fan_out)
        raw_b = jnp.zeros((fan_out,), jnp.float32)
        eff_b = raw_b * lrmul                                 # (fan_out,)
        params.append((eff_w, eff_b))
    return params


# --------------------------------------------------------------------------
# Wrapper
# --------------------------------------------------------------------------
def mapping_forward(z, params, *, block_m=512):
    B, dim_in = z.shape
    n_layers = len(params)
    dim_out = params[-1][0].shape[1]

    # One lane-dense padded feature width shared by all layers.
    d_pad = _round_up(max([dim_in] + [w.shape[1] for w, _ in params]), LANE)

    # Stack + zero-pad weights (bf16) and biases (f32, shaped (L, 1, D_pad))
    # into single VMEM-resident blobs with a constant index_map.
    w_stack = jnp.stack([
        jnp.pad(w, ((0, d_pad - w.shape[0]), (0, d_pad - w.shape[1])))
        for w, _ in params]).astype(jnp.bfloat16)             # (L, D_pad, D_pad)
    b_stack = jnp.stack([
        jnp.pad(b.reshape(1, -1), ((0, 0), (0, d_pad - b.shape[-1])))
        for _, b in params]).astype(jnp.float32)              # (L, 1, D_pad)

    # Batch tiling: TM multiple of 8, capped at block_m AND at ceil(B/2) so
    # batches big enough to split always produce >= 2 "parallel" tiles for
    # v7x's two TensorCores.
    tm_cap = _round_up(block_m, SUBLANE)
    half_b = _round_up(pl.cdiv(max(B, 1), 2), SUBLANE)
    tm = max(SUBLANE, min(tm_cap, half_b))
    b_pad = _round_up(max(B, 1), tm)
    z_pad = jnp.pad(z.astype(jnp.float32),
                    ((0, b_pad - B), (0, d_pad - dim_in)))
    grid_m = b_pad // tm

    kernel = functools.partial(mapping_kernel, true_dim_in=dim_in,
                               n_layers=n_layers, slope=0.2)

    flops = 2 * b_pad * d_pad * d_pad * n_layers + 6 * b_pad * d_pad
    bytes_accessed = (4 * z_pad.size + 2 * w_stack.size
                      + 4 * b_stack.size + 4 * b_pad * d_pad)

    out = pl.pallas_call(
        kernel,
        out_shape=jax.ShapeDtypeStruct((b_pad, d_pad), jnp.float32),
        grid_spec=pltpu.PrefetchScalarGridSpec(
            num_scalar_prefetch=0,
            grid=(grid_m,),
            in_specs=[
                # activations: one batch tile per grid step (pipelined)
                pl.BlockSpec((tm, d_pad), lambda i: (i, 0)),
                # weights / biases: constant index -> resident across tiles
                pl.BlockSpec((n_layers, d_pad, d_pad), lambda i: (0, 0, 0)),
                pl.BlockSpec((n_layers, 1, d_pad), lambda i: (0, 0, 0)),
            ],
            out_specs=pl.BlockSpec((tm, d_pad), lambda i: (i, 0)),
        ),
        compiler_params=pltpu.CompilerParams(
            dimension_semantics=("parallel",)),
        cost_estimate=pl.CostEstimate(
            flops=flops,
            transcendentals=b_pad,
            bytes_accessed=bytes_accessed),
    )(z_pad, w_stack, b_stack)

    return out[:B, :dim_out].astype(z.dtype)


# --------------------------------------------------------------------------
# Pure-JAX references (mirror the PyTorch module)
# --------------------------------------------------------------------------
def mapping_reference(z, params, *, matmul_dtype=jnp.float32):
    h = z.astype(jnp.float32)
    h = h * jax.lax.rsqrt(jnp.mean(h * h, axis=-1, keepdims=True) + 1e-8)
    for w, b in params:
        y = jnp.dot(h.astype(matmul_dtype), w.astype(matmul_dtype),
                    preferred_element_type=jnp.float32) + b
        h = jnp.maximum(y, 0.2 * y)
    return h


if __name__ == "__main__":
    dim_in, dim_out, nf, n_layers = 32, 32, 128, 4

    key = jax.random.PRNGKey(0)
    zkey, z2key, pkey = jax.random.split(key, 3)
    params = init_mapping_params(pkey, dim_in, dim_out, nf, n_layers)

    # Small batch (single tile, like the module's typical latent batch).
    z = jax.random.normal(zkey, (8, dim_in), jnp.float32)
    out = jax.block_until_ready(mapping_forward(z, params))
    assert out.shape == (8, dim_out)
    # Tight check vs a reference using the same bf16-operand / f32-accum math.
    ref_bf16 = mapping_reference(z, params, matmul_dtype=jnp.bfloat16)
    np.testing.assert_allclose(np.asarray(out), np.asarray(ref_bf16),
                               rtol=1e-3, atol=1e-3)
    # Loose check vs the pure-f32 (PyTorch-equivalent) reference.
    ref_f32 = mapping_reference(z, params)
    np.testing.assert_allclose(np.asarray(out), np.asarray(ref_f32),
                               rtol=5e-2, atol=5e-2)

    # Larger ragged batch: exercises batch tiling (grid >= 2 for the two-TC
    # split on v7x) plus the pad/slice path.
    z2 = jax.random.normal(z2key, (300, dim_in), jnp.float32)
    out2 = jax.block_until_ready(mapping_forward(z2, params, block_m=512))
    assert out2.shape == (300, dim_out)
    ref2_bf16 = mapping_reference(z2, params, matmul_dtype=jnp.bfloat16)
    np.testing.assert_allclose(np.asarray(out2), np.asarray(ref2_bf16),
                               rtol=1e-3, atol=1e-3)
    ref2_f32 = mapping_reference(z2, params)
    np.testing.assert_allclose(np.asarray(out2), np.asarray(ref2_f32),
                               rtol=5e-2, atol=5e-2)

    print("KERNEL_OK")
</pallas_src>

<mosaic_0001>
module attributes {stable_mosaic.version = 11 : i64} {
  func.func @mapping_kernel(%arg0: i32, %arg1: memref<8x128xf32, #tpu.memory_space<vmem>>, %arg2: memref<4x128x128xbf16, #tpu.memory_space<vmem>>, %arg3: memref<4x1x128xf32, #tpu.memory_space<vmem>>, %arg4: memref<8x128xf32, #tpu.memory_space<vmem>>) attributes {dimension_semantics = [#tpu.dimension_semantics<parallel>], iteration_bounds = array<i64: 1>, scalar_prefetch = 0 : i64, scratch_operands = 0 : i64, tpu.core_type = #tpu.core_type<tc>, window_params = [{transform_indices = @transform_0, window_bounds = array<i64: 8, 128>}, {pipeline_mode = #tpu.pipeline_mode<synchronous>, transform_indices = @transform_1, window_bounds = array<i64: 4, 128, 128>}, {pipeline_mode = #tpu.pipeline_mode<synchronous>, transform_indices = @transform_2, window_bounds = array<i64: 4, 1, 128>}, {transform_indices = @transform_3, window_bounds = array<i64: 8, 128>}]} {
    %c0 = arith.constant 0 : index
    %c0_0 = arith.constant 0 : index
    %0 = vector.load %arg1[%c0, %c0_0] : memref<8x128xf32, #tpu.memory_space<vmem>>, vector<8x128xf32>
    %1 = arith.mulf %0, %0 : vector<8x128xf32>
    %cst = arith.constant dense<0.000000e+00> : vector<8xf32>
    %2 = vector.multi_reduction <add>, %1, %cst [1] : vector<8x128xf32> to vector<8xf32>
    %3 = vector.shape_cast %2 : vector<8xf32> to vector<8x1xf32>
    %cst_1 = arith.constant 3.125000e-02 : f32
    %4 = vector.broadcast %cst_1 : f32 to vector<8x1xf32>
    %5 = arith.mulf %3, %4 : vector<8x1xf32>
    %cst_2 = arith.constant 9.99999993E-9 : f32
    %6 = vector.broadcast %cst_2 : f32 to vector<8x1xf32>
    %7 = arith.addf %5, %6 : vector<8x1xf32>
    %8 = math.rsqrt %7 : vector<8x1xf32>
    %9 = vector.broadcast %8 : vector<8x1xf32> to vector<8x128xf32>
    %10 = arith.mulf %0, %9 : vector<8x128xf32>
    %11 = arith.truncf %10 : vector<8x128xf32> to vector<8x128xbf16>
    %c0_3 = arith.constant 0 : index
    %c0_4 = arith.constant 0 : index
    %c0_5 = arith.constant 0 : index
    %12 = vector.load %arg2[%c0_3, %c0_4, %c0_5] : memref<4x128x128xbf16, #tpu.memory_space<vmem>>, vector<1x128x128xbf16>
    %13 = vector.shape_cast %12 : vector<1x128x128xbf16> to vector<128x128xbf16>
    %cst_6 = arith.constant dense<0.000000e+00> : vector<8x128xf32>
    %14 = tpu.matmul %11, %13, %cst_6 {dimension_numbers = #tpu.dot_dimension_numbers<[1], [0], [0], [1], [0, 0, 1, 1], [], []>} : vector<8x128xbf16>, vector<128x128xbf16>, vector<8x128xf32> -> vector<8x128xf32>
    %c0_7 = arith.constant 0 : index
    %c0_8 = arith.constant 0 : index
    %c0_9 = arith.constant 0 : index
    %15 = vector.load %arg3[%c0_7, %c0_8, %c0_9] : memref<4x1x128xf32, #tpu.memory_space<vmem>>, vector<1x1x128xf32>
    %16 = vector.shape_cast %15 : vector<1x1x128xf32> to vector<1x128xf32>
    %17 = vector.broadcast %16 : vector<1x128xf32> to vector<8x128xf32>
    %18 = arith.addf %14, %17 : vector<8x128xf32>
    %cst_10 = arith.constant 2.000000e-01 : f32
    %19 = vector.broadcast %cst_10 : f32 to vector<8x128xf32>
    %20 = arith.mulf %19, %18 : vector<8x128xf32>
    %21 = arith.maximumf %18, %20 : vector<8x128xf32>
    %22 = arith.truncf %21 : vector<8x128xf32> to vector<8x128xbf16>
    %c1 = arith.constant 1 : index
    %c0_11 = arith.constant 0 : index
    %c0_12 = arith.constant 0 : index
    %23 = vector.load %arg2[%c1, %c0_11, %c0_12] : memref<4x128x128xbf16, #tpu.memory_space<vmem>>, vector<1x128x128xbf16>
    %24 = vector.shape_cast %23 : vector<1x128x128xbf16> to vector<128x128xbf16>
    %cst_13 = arith.constant dense<0.000000e+00> : vector<8x128xf32>
    %25 = tpu.matmul %22, %24, %cst_13 {dimension_numbers = #tpu.dot_dimension_numbers<[1], [0], [0], [1], [0, 0, 1, 1], [], []>} : vector<8x128xbf16>, vector<128x128xbf16>, vector<8x128xf32> -> vector<8x128xf32>
    %c1_14 = arith.constant 1 : index
    %c0_15 = arith.constant 0 : index
    %c0_16 = arith.constant 0 : index
    %26 = vector.load %arg3[%c1_14, %c0_15, %c0_16] : memref<4x1x128xf32, #tpu.memory_space<vmem>>, vector<1x1x128xf32>
    %27 = vector.shape_cast %26 : vector<1x1x128xf32> to vector<1x128xf32>
    %28 = vector.broadcast %27 : vector<1x128xf32> to vector<8x128xf32>
    %29 = arith.addf %25, %28 : vector<8x128xf32>
    %cst_17 = arith.constant 2.000000e-01 : f32
    %30 = vector.broadcast %cst_17 : f32 to vector<8x128xf32>
    %31 = arith.mulf %30, %29 : vector<8x128xf32>
    %32 = arith.maximumf %29, %31 : vector<8x128xf32>
    %33 = arith.truncf %32 : vector<8x128xf32> to vector<8x128xbf16>
    %c2 = arith.constant 2 : index
    %c0_18 = arith.constant 0 : index
    %c0_19 = arith.constant 0 : index
    %34 = vector.load %arg2[%c2, %c0_18, %c0_19] : memref<4x128x128xbf16, #tpu.memory_space<vmem>>, vector<1x128x128xbf16>
    %35 = vector.shape_cast %34 : vector<1x128x128xbf16> to vector<128x128xbf16>
    %cst_20 = arith.constant dense<0.000000e+00> : vector<8x128xf32>
    %36 = tpu.matmul %33, %35, %cst_20 {dimension_numbers = #tpu.dot_dimension_numbers<[1], [0], [0], [1], [0, 0, 1, 1], [], []>} : vector<8x128xbf16>, vector<128x128xbf16>, vector<8x128xf32> -> vector<8x128xf32>
    %c2_21 = arith.constant 2 : index
    %c0_22 = arith.constant 0 : index
    %c0_23 = arith.constant 0 : index
    %37 = vector.load %arg3[%c2_21, %c0_22, %c0_23] : memref<4x1x128xf32, #tpu.memory_space<vmem>>, vector<1x1x128xf32>
    %38 = vector.shape_cast %37 : vector<1x1x128xf32> to vector<1x128xf32>
    %39 = vector.broadcast %38 : vector<1x128xf32> to vector<8x128xf32>
    %40 = arith.addf %36, %39 : vector<8x128xf32>
    %cst_24 = arith.constant 2.000000e-01 : f32
    %41 = vector.broadcast %cst_24 : f32 to vector<8x128xf32>
    %42 = arith.mulf %41, %40 : vector<8x128xf32>
    %43 = arith.maximumf %40, %42 : vector<8x128xf32>
    %44 = arith.truncf %43 : vector<8x128xf32> to vector<8x128xbf16>
    %c3 = arith.constant 3 : index
    %c0_25 = arith.constant 0 : index
    %c0_26 = arith.constant 0 : index
    %45 = vector.load %arg2[%c3, %c0_25, %c0_26] : memref<4x128x128xbf16, #tpu.memory_space<vmem>>, vector<1x128x128xbf16>
    %46 = vector.shape_cast %45 : vector<1x128x128xbf16> to vector<128x128xbf16>
    %cst_27 = arith.constant dense<0.000000e+00> : vector<8x128xf32>
    %47 = tpu.matmul %44, %46, %cst_27 {dimension_numbers = #tpu.dot_dimension_numbers<[1], [0], [0], [1], [0, 0, 1, 1], [], []>} : vector<8x128xbf16>, vector<128x128xbf16>, vector<8x128xf32> -> vector<8x128xf32>
    %c3_28 = arith.constant 3 : index
    %c0_29 = arith.constant 0 : index
    %c0_30 = arith.constant 0 : index
    %48 = vector.load %arg3[%c3_28, %c0_29, %c0_30] : memref<4x1x128xf32, #tpu.memory_space<vmem>>, vector<1x1x128xf32>
    %49 = vector.shape_cast %48 : vector<1x1x128xf32> to vector<1x128xf32>
    %50 = vector.broadcast %49 : vector<1x128xf32> to vector<8x128xf32>
    %51 = arith.addf %47, %50 : vector<8x128xf32>
    %cst_31 = arith.constant 2.000000e-01 : f32
    %52 = vector.broadcast %cst_31 : f32 to vector<8x128xf32>
    %53 = arith.mulf %52, %51 : vector<8x128xf32>
    %54 = arith.maximumf %51, %53 : vector<8x128xf32>
    %c0_32 = arith.constant 0 : index
    %c0_33 = arith.constant 0 : index
    %55 = vector.load %arg4[%c0_32, %c0_33] : memref<8x128xf32, #tpu.memory_space<vmem>>, vector<8x128xf32>
    tpu.vector_store %arg4[%c0_32, %c0_33], %54 {strides = array<i32>} : memref<8x128xf32, #tpu.memory_space<vmem>>, vector<8x128xf32>,
    return
  }
  func.func @transform_0(%arg0: i32) -> (i32, i32) {
    %c0_i32 = arith.constant 0 : i32
    %c0_i32_0 = arith.constant 0 : i32
    return %arg0, %c0_i32 : i32, i32
  }
  func.func @transform_1(%arg0: i32) -> (i32, i32, i32) {
    %c0_i32 = arith.constant 0 : i32
    %c0_i32_0 = arith.constant 0 : i32
    %c0_i32_1 = arith.constant 0 : i32
    %c0_i32_2 = arith.constant 0 : i32
    return %c0_i32, %c0_i32_0, %c0_i32_1 : i32, i32, i32
  }
  func.func @transform_2(%arg0: i32) -> (i32, i32, i32) {
    %c0_i32 = arith.constant 0 : i32
    %c0_i32_0 = arith.constant 0 : i32
    %c0_i32_1 = arith.constant 0 : i32
    %c0_i32_2 = arith.constant 0 : i32
    return %c0_i32, %c0_i32_0, %c0_i32_1 : i32, i32, i32
  }
  func.func @transform_3(%arg0: i32) -> (i32, i32) {
    %c0_i32 = arith.constant 0 : i32
    %c0_i32_0 = arith.constant 0 : i32
    return %arg0, %c0_i32 : i32, i32
  }
}

</mosaic_0001>

<llo_original>
// kernel: tpu_custom_call.1
$region0: #{tpu_custom_call.1}
  #allocation0 [shape = 'u32[]', space=smem, size = 0x4, offset = 0x4, fixed_abs, tag = 'smem constant byte address 0x4 - core index']
  #allocation1 [shape = 'u32[144,128]{1,0:T(1,128)}', space=vmem, size = 0x12000, scoped, tag = 'internal scratch']
  %s0 = inlined_call_operand.hbm [shape: f32[8,128], index: 0, kind: input, shape index: {}]
  %s1 = inlined_call_operand.hbm [shape: bf16[4,128,128], index: 1, kind: input, shape index: {}]
  %s2 = inlined_call_operand.vmem [shape: f32[4,1,128], index: 2, kind: input, shape index: {}]
  %s3 = inlined_call_operand.hbm [shape: f32[8,128], index: 3, kind: output, shape index: {}]
  %s4 = sld [smem:[#allocation0]]
  $region30: #{tpu_custom_call.1} parent=0
    _
  %s6 = ssub.s32 1, %s4
  %s7 = scalar_select 0, %s6, %s4
  $region1: #{tpu_custom_call.1} parent=0
    #allocation2 [shape = 'u8[4096]{0}', space=vmem, size = 0x1000, scoped, tag = 'input window, operand 0, single buffered']
    #allocation3 [shape = 's32[1]{0}', space=sflag, size = 0x4, scoped, tag = 'scoped memory for tpu_custom_call.1']
    #allocation4 [shape = 's32[1]{0}', space=sflag, size = 0x4, scoped, tag = 'scoped memory for tpu_custom_call.1']
    #allocation5 [shape = 'u8[131072]{0}', space=vmem, size = 0x20000, scoped, tag = 'input window, operand 1, single buffered']
    #allocation6 [shape = 's32[1]{0}', space=sflag, size = 0x4, scoped, tag = 'scoped memory for tpu_custom_call.1']
    #allocation7 [shape = 'u8[4096]{0}', space=vmem, size = 0x1000, scoped, tag = 'output window, operand 0, single buffered']
    %8 = vsyncpa [#allocation3], 0
    %9 = vsyncpa [#allocation6], 0
    %10 = vsyncpa [#allocation4], 0
    // Predicated region
    $region2: #{tpu_custom_call.1} parent=1 // pred_check
      _
    $region3: #{tpu_custom_call.1} parent=1 // pred_check_branch
      %12 = sbr.rel (0) target = $region5
    $region4: #{tpu_custom_call.1} parent=1 // pred_region
      %s14 = ssub.s32 128, 128
      %15 = vsyncadd [#allocation3], %s14
      %s17 = sshll.u32 [#allocation2], 4
      %s18 = int_to_ptr.vmem [resolvable:$true] %s17
      %20 = dma.hbm_to_vmem [thread:$0]  %s0, 128, %s18, [#allocation3]
    $region5: #{tpu_custom_call.1} parent=1 // pred_fallthru
      _
    // Predicated region
    $region6: #{tpu_custom_call.1} parent=1 // pred_check
      _
    $region7: #{tpu_custom_call.1} parent=1 // pred_check_branch
      %22 = sbr.rel (0) target = $region9
    $region8: #{tpu_custom_call.1} parent=1 // pred_region
      %s24 = ssub.s32 4096, 4096
      %25 = vsyncadd [#allocation6], %s24
      %s26 = sshll.u32 [#allocation5], 4
      %s27 = int_to_ptr.vmem [resolvable:$true] %s26
      %32 = dma.hbm_to_vmem [thread:$0]  %s1, 4096, %s27, [#allocation6], 64, 64, 4
    $region9: #{tpu_custom_call.1} parent=1 // pred_fallthru
      _
    // Predicated region
    $region10: #{tpu_custom_call.1} parent=1 // pred_check
      _
    $region11: #{tpu_custom_call.1} parent=1 // pred_check_branch
      %34 = sbr.rel (0) target = $region13
    $region12: #{tpu_custom_call.1} parent=1 // pred_region
      _
    $region13: #{tpu_custom_call.1} parent=1 // pred_fallthru
      _
    // Predicated region
    $region14: #{tpu_custom_call.1} parent=1 // pred_check
      _
    $region15: #{tpu_custom_call.1} parent=1 // pred_check_branch
      %36 = sbr.rel (0) target = $region17
    $region16: #{tpu_custom_call.1} parent=1 // pred_region
      %37 = dma.done [#allocation3], 128
    $region17: #{tpu_custom_call.1} parent=1 // pred_fallthru
      _
    // Predicated region
    $region18: #{tpu_custom_call.1} parent=1 // pred_check
      _
    $region19: #{tpu_custom_call.1} parent=1 // pred_check_branch
      %39 = sbr.rel (0) target = $region21
    $region20: #{tpu_custom_call.1} parent=1 // pred_region
      %40 = dma.done [#allocation6], 4096
    $region21: #{tpu_custom_call.1} parent=1 // pred_fallthru
      _
    %v42 = vld [vmem:[#allocation2] sm:$0xff]
    %v43 = vmul.f32 %v42, %v42
    %44 = vadd.xlane.f32.xlu0 %v43
    %v45 = vpop.xlane.xlu0 %44
    %v46 = vmul.f32 %v45, 0.03125
    %v47 = vadd.f32 %v46, 1e-08
    %v48 = vrsqrt.pop %v47
    %v49 = vmul.f32 %v42, %v48
    %v50 = vpack.c.bf16 %v49, %v49
    %v51 = vld [vmem:[#allocation5] sm:$0xf]
    %v52 = vld [vmem:[#allocation5 + $0x4] sm:$0xf]
    %v53 = vld [vmem:[#allocation5 + $0x8] sm:$0xf]
    %v54 = vld [vmem:[#allocation5 + $0xc] sm:$0xf]
    %v55 = vld [vmem:[#allocation5 + $0x10] sm:$0xf]
    %v56 = vld [vmem:[#allocation5 + $0x14] sm:$0xf]
    %v57 = vld [vmem:[#allocation5 + $0x18] sm:$0xf]
    %v58 = vld [vmem:[#allocation5 + $0x1c] sm:$0xf]
    %v59 = vld [vmem:[#allocation5 + $0x20] sm:$0xf]
    %v60 = vld [vmem:[#allocation5 + $0x24] sm:$0xf]
    %v61 = vld [vmem:[#allocation5 + $0x28] sm:$0xf]
    %v62 = vld [vmem:[#allocation5 + $0x2c] sm:$0xf]
    %v63 = vld [vmem:[#allocation5 + $0x30] sm:$0xf]
    %v64 = vld [vmem:[#allocation5 + $0x34] sm:$0xf]
    %v65 = vld [vmem:[#allocation5 + $0x38] sm:$0xf]
    %v66 = vld [vmem:[#allocation5 + $0x3c] sm:$0xf]
    %v67 = vld [vmem:[%s2] sm:$0x1]
    %v69 = vlaneseq
    %v70 = vshrl.u32 %v69, 7
    %v71 = vsub.s32 0, %v70
    %v72 = vrot.slane %v67, %v71
    %v90 = vunpack.c.l.b16 %v51
    %v91 = vunpack.c.l.b16 %v52
    %v92 = vunpack.c.l.b16 %v53
    %v93 = vunpack.c.l.b16 %v54
    %v94 = vunpack.c.l.b16 %v55
    %v95 = vunpack.c.l.b16 %v56
    %v96 = vunpack.c.l.b16 %v57
    %v97 = vunpack.c.l.b16 %v58
    %v98 = vunpack.c.l.b16 %v59
    %v99 = vunpack.c.l.b16 %v60
    %v100 = vunpack.c.l.b16 %v61
    %v101 = vunpack.c.l.b16 %v62
    %v102 = vunpack.c.l.b16 %v63
    %v103 = vunpack.c.l.b16 %v64
    %v104 = vunpack.c.l.b16 %v65
    %v105 = vunpack.c.l.b16 %v66
    %v106 = vpack.c.b16 %v91, %v90
    %v107 = vpack.c.b16 %v93, %v92
    %v108 = vpack.c.b16 %v95, %v94
    %v109 = vpack.c.b16 %v97, %v96
    %v110 = vpack.c.b16 %v99, %v98
    %v111 = vpack.c.b16 %v101, %v100
    %v112 = vpack.c.b16 %v103, %v102
    %v113 = vpack.c.b16 %v105, %v104
    %122 = vmatprep.subr.bf16.mxu0 0
    %123 = vmatpush1.bf16.msra.mxu0 %v106
    %124 = vmatprep.subr.bf16.mxu0 0
    %125 = vmatpush1.bf16.msra.mxu0 %v107
    %126 = vmatprep.subr.bf16.mxu0 0
    %127 = vmatpush1.bf16.msra.mxu0 %v108
    %128 = vmatprep.subr.bf16.mxu0 0
    %129 = vmatpush1.bf16.msra.mxu0 %v109
    %130 = vmatprep.subr.bf16.mxu0 0
    %131 = vmatpush1.bf16.msra.mxu0 %v110
    %132 = vmatprep.subr.bf16.mxu0 0
    %133 = vmatpush1.bf16.msra.mxu0 %v111
    %134 = vmatprep.subr.bf16.mxu0 0
    %135 = vmatpush1.bf16.msra.mxu0 %v112
    %136 = vmatprep.subr.bf16.mxu0 0
    %137 = vmatpush1.bf16.msra.mxu0 %v113
    %138 = vmatprep.subr.bf16.mxu0 0
    %139 = vmatpush1.bf16.msra.mxu0 0
    %140 = vmatprep.subr.bf16.mxu0 0
    %141 = vmatpush1.bf16.msra.mxu0 0
    %142 = vmatprep.subr.bf16.mxu0 0
    %143 = vmatpush1.bf16.msra.mxu0 0
    %144 = vmatprep.subr.bf16.mxu0 0
    %145 = vmatpush1.bf16.msra.mxu0 0
    %146 = vmatprep.subr.bf16.mxu0 0
    %147 = vmatpush1.bf16.msra.mxu0 0
    %148 = vmatprep.subr.bf16.mxu0 0
    %149 = vmatpush1.bf16.msra.mxu0 0
    %150 = vmatprep.subr.bf16.mxu0 0
    %151 = vmatpush1.bf16.msra.mxu0 0
    %152 = vmatprep.subr.bf16.mxu0 0
    %153 = vmatpush1.bf16.msra.mxu0 0
    %154 = vmatprep.mubr.bf16.mxu0 0
    %155 = vmatmul.mubr.bf16.gmra.mrb[0].mxu0 %v50
    %v156 = vpop.f32.mrb[0].mxu0
    %v157 = vadd.f32 %v72, %v156
    %v158 = vpop.f32.mrb[0].mxu0
    %v159 = vpop.f32.mrb[0].mxu0
    %v160 = vpop.f32.mrb[0].mxu0
    %161 = vdwg.mxu0
    %v162 = vmul.f32 %v157, 0.2
    %v163 = vmax.f32 %v157, %v162
    %v164 = vpack.c.bf16 %v163, %v163
    %s165 = scalar_lea.vmem [#allocation5], 64
    %v166 = vld [vmem:[%s165] sm:$0xf]
    %v167 = vld [vmem:[%s165 + $0x4] sm:$0xf]
    %v168 = vld [vmem:[%s165 + $0x8] sm:$0xf]
    %v169 = vld [vmem:[%s165 + $0xc] sm:$0xf]
    %v170 = vld [vmem:[%s165 + $0x10] sm:$0xf]
    %v171 = vld [vmem:[%s165 + $0x14] sm:$0xf]
    %v172 = vld [vmem:[%s165 + $0x18] sm:$0xf]
    %v173 = vld [vmem:[%s165 + $0x1c] sm:$0xf]
    %v174 = vld [vmem:[%s165 + $0x20] sm:$0xf]
    %v175 = vld [vmem:[%s165 + $0x24] sm:$0xf]
    %v176 = vld [vmem:[%s165 + $0x28] sm:$0xf]
    %v177 = vld [vmem:[%s165 + $0x2c] sm:$0xf]
    %v178 = vld [vmem:[%s165 + $0x30] sm:$0xf]
    %v179 = vld [vmem:[%s165 + $0x34] sm:$0xf]
    %v180 = vld [vmem:[%s165 + $0x38] sm:$0xf]
    %v181 = vld [vmem:[%s165 + $0x3c] sm:$0xf]
    %s182 = scalar_lea.vmem %s2, 1
    %v183 = vld [vmem:[%s182] sm:$0x1]
    %v185 = vlaneseq
    %v186 = vshrl.u32 %v185, 7
    %v187 = vsub.s32 0, %v186
    %v188 = vrot.slane %v183, %v187
    %v206 = vunpack.c.l.b16 %v166
    %v207 = vunpack.c.l.b16 %v167
    %v208 = vunpack.c.l.b16 %v168
    %v209 = vunpack.c.l.b16 %v169
    %v210 = vunpack.c.l.b16 %v170
    %v211 = vunpack.c.l.b16 %v171
    %v212 = vunpack.c.l.b16 %v172
    %v213 = vunpack.c.l.b16 %v173
    %v214 = vunpack.c.l.b16 %v174
    %v215 = vunpack.c.l.b16 %v175
    %v216 = vunpack.c.l.b16 %v176
    %v217 = vunpack.c.l.b16 %v177
    %v218 = vunpack.c.l.b16 %v178
    %v219 = vunpack.c.l.b16 %v179
    %v220 = vunpack.c.l.b16 %v180
    %v221 = vunpack.c.l.b16 %v181
    %v222 = vpack.c.b16 %v207, %v206
    %v223 = vpack.c.b16 %v209, %v208
    %v224 = vpack.c.b16 %v211, %v210
    %v225 = vpack.c.b16 %v213, %v212
    %v226 = vpack.c.b16 %v215, %v214
    %v227 = vpack.c.b16 %v217, %v216
    %v228 = vpack.c.b16 %v219, %v218
    %v229 = vpack.c.b16 %v221, %v220
    %238 = vmatprep.subr.bf16.mxu0 0
    %239 = vmatpush1.bf16.msra.mxu0 %v222
    %240 = vmatprep.subr.bf16.mxu0 0
    %241 = vmatpush1.bf16.msra.mxu0 %v223
    %242 = vmatprep.subr.bf16.mxu0 0
    %243 = vmatpush1.bf16.msra.mxu0 %v224
    %244 = vmatprep.subr.bf16.mxu0 0
    %245 = vmatpush1.bf16.msra.mxu0 %v225
    %246 = vmatprep.subr.bf16.mxu0 0
    %247 = vmatpush1.bf16.msra.mxu0 %v226
    %248 = vmatprep.subr.bf16.mxu0 0
    %249 = vmatpush1.bf16.msra.mxu0 %v227
    %250 = vmatprep.subr.bf16.mxu0 0
    %251 = vmatpush1.bf16.msra.mxu0 %v228
    %252 = vmatprep.subr.bf16.mxu0 0
    %253 = vmatpush1.bf16.msra.mxu0 %v229
    %254 = vmatprep.subr.bf16.mxu0 0
    %255 = vmatpush1.bf16.msra.mxu0 0
    %256 = vmatprep.subr.bf16.mxu0 0
    %257 = vmatpush1.bf16.msra.mxu0 0
    %258 = vmatprep.subr.bf16.mxu0 0
    %259 = vmatpush1.bf16.msra.mxu0 0
    %260 = vmatprep.subr.bf16.mxu0 0
    %261 = vmatpush1.bf16.msra.mxu0 0
    %262 = vmatprep.subr.bf16.mxu0 0
    %263 = vmatpush1.bf16.msra.mxu0 0
    %264 = vmatprep.subr.bf16.mxu0 0
    %265 = vmatpush1.bf16.msra.mxu0 0
    %266 = vmatprep.subr.bf16.mxu0 0
    %267 = vmatpush1.bf16.msra.mxu0 0
    %268 = vmatprep.subr.bf16.mxu0 0
    %269 = vmatpush1.bf16.msra.mxu0 0
    %270 = vmatprep.mubr.bf16.mxu0 0
    %271 = vmatmul.mubr.bf16.gmra.mrb[0].mxu0 %v164
    %v272 = vpop.f32.mrb[0].mxu0
    %v273 = vadd.f32 %v188, %v272
    %v274 = vpop.f32.mrb[0].mxu0
    %v275 = vpop.f32.mrb[0].mxu0
    %v276 = vpop.f32.mrb[0].mxu0
    %277 = vdwg.mxu0
    %v278 = vmul.f32 %v273, 0.2
    %v279 = vmax.f32 %v273, %v278
    %v280 = vpack.c.bf16 %v279, %v279
    %s281 = scalar_lea.vmem [#allocation5], 128
    %v282 = vld [vmem:[%s281] sm:$0xf]
    %v283 = vld [vmem:[%s281 + $0x4] sm:$0xf]
    %v284 = vld [vmem:[%s281 + $0x8] sm:$0xf]
    %v285 = vld [vmem:[%s281 + $0xc] sm:$0xf]
    %v286 = vld [vmem:[%s281 + $0x10] sm:$0xf]
    %v287 = vld [vmem:[%s281 + $0x14] sm:$0xf]
    %v288 = vld [vmem:[%s281 + $0x18] sm:$0xf]
    %v289 = vld [vmem:[%s281 + $0x1c] sm:$0xf]
    %v290 = vld [vmem:[%s281 + $0x20] sm:$0xf]
    %v291 = vld [vmem:[%s281 + $0x24] sm:$0xf]
    %v292 = vld [vmem:[%s281 + $0x28] sm:$0xf]
    %v293 = vld [vmem:[%s281 + $0x2c] sm:$0xf]
    %v294 = vld [vmem:[%s281 + $0x30] sm:$0xf]
    %v295 = vld [vmem:[%s281 + $0x34] sm:$0xf]
    %v296 = vld [vmem:[%s281 + $0x38] sm:$0xf]
    %v297 = vld [vmem:[%s281 + $0x3c] sm:$0xf]
    %s298 = scalar_lea.vmem %s2, 2
    %v299 = vld [vmem:[%s298] sm:$0x1]
    %v301 = vlaneseq
    %v302 = vshrl.u32 %v301, 7
    %v303 = vsub.s32 0, %v302
    %v304 = vrot.slane %v299, %v303
    %v322 = vunpack.c.l.b16 %v282
    %v323 = vunpack.c.l.b16 %v283
    %v324 = vunpack.c.l.b16 %v284
    %v325 = vunpack.c.l.b16 %v285
    %v326 = vunpack.c.l.b16 %v286
    %v327 = vunpack.c.l.b16 %v287
    %v328 = vunpack.c.l.b16 %v288
    %v329 = vunpack.c.l.b16 %v289
    %v330 = vunpack.c.l.b16 %v290
    %v331 = vunpack.c.l.b16 %v291
    %v332 = vunpack.c.l.b16 %v292
    %v333 = vunpack.c.l.b16 %v293
    %v334 = vunpack.c.l.b16 %v294
    %v335 = vunpack.c.l.b16 %v295
    %v336 = vunpack.c.l.b16 %v296
    %v337 = vunpack.c.l.b16 %v297
    %v338 = vpack.c.b16 %v323, %v322
    %v339 = vpack.c.b16 %v325, %v324
    %v340 = vpack.c.b16 %v327, %v326
    %v341 = vpack.c.b16 %v329, %v328
    %v342 = vpack.c.b16 %v331, %v330
    %v343 = vpack.c.b16 %v333, %v332
    %v344 = vpack.c.b16 %v335, %v334
    %v345 = vpack.c.b16 %v337, %v336
    %354 = vmatprep.subr.bf16.mxu0 0
    %355 = vmatpush1.bf16.msra.mxu0 %v338
    %356 = vmatprep.subr.bf16.mxu0 0
    %357 = vmatpush1.bf16.msra.mxu0 %v339
    %358 = vmatprep.subr.bf16.mxu0 0
    %359 = vmatpush1.bf16.msra.mxu0 %v340
    %360 = vmatprep.subr.bf16.mxu0 0
    %361 = vmatpush1.bf16.msra.mxu0 %v341
    %362 = vmatprep.subr.bf16.mxu0 0
    %363 = vmatpush1.bf16.msra.mxu0 %v342
    %364 = vmatprep.subr.bf16.mxu0 0
    %365 = vmatpush1.bf16.msra.mxu0 %v343
    %366 = vmatprep.subr.bf16.mxu0 0
    %367 = vmatpush1.bf16.msra.mxu0 %v344
    %368 = vmatprep.subr.bf16.mxu0 0
    %369 = vmatpush1.bf16.msra.mxu0 %v345
    %370 = vmatprep.subr.bf16.mxu0 0
    %371 = vmatpush1.bf16.msra.mxu0 0
    %372 = vmatprep.subr.bf16.mxu0 0
    %373 = vmatpush1.bf16.msra.mxu0 0
    %374 = vmatprep.subr.bf16.mxu0 0
    %375 = vmatpush1.bf16.msra.mxu0 0
    %376 = vmatprep.subr.bf16.mxu0 0
    %377 = vmatpush1.bf16.msra.mxu0 0
    %378 = vmatprep.subr.bf16.mxu0 0
    %379 = vmatpush1.bf16.msra.mxu0 0
    %380 = vmatprep.subr.bf16.mxu0 0
    %381 = vmatpush1.bf16.msra.mxu0 0
    %382 = vmatprep.subr.bf16.mxu0 0
    %383 = vmatpush1.bf16.msra.mxu0 0
    %384 = vmatprep.subr.bf16.mxu0 0
    %385 = vmatpush1.bf16.msra.mxu0 0
    %386 = vmatprep.mubr.bf16.mxu0 0
    %387 = vmatmul.mubr.bf16.gmra.mrb[0].mxu0 %v280
    %v388 = vpop.f32.mrb[0].mxu0
    %v389 = vadd.f32 %v304, %v388
    %v390 = vpop.f32.mrb[0].mxu0
    %v391 = vpop.f32.mrb[0].mxu0
    %v392 = vpop.f32.mrb[0].mxu0
    %393 = vdwg.mxu0
    %v394 = vmul.f32 %v389, 0.2
    %v395 = vmax.f32 %v389, %v394
    %v396 = vpack.c.bf16 %v395, %v395
    %s397 = scalar_lea.vmem [#allocation5], 192
    %v398 = vld [vmem:[%s397] sm:$0xf]
    %v399 = vld [vmem:[%s397 + $0x4] sm:$0xf]
    %v400 = vld [vmem:[%s397 + $0x8] sm:$0xf]
    %v401 = vld [vmem:[%s397 + $0xc] sm:$0xf]
    %v402 = vld [vmem:[%s397 + $0x10] sm:$0xf]
    %v403 = vld [vmem:[%s397 + $0x14] sm:$0xf]
    %v404 = vld [vmem:[%s397 + $0x18] sm:$0xf]
    %v405 = vld [vmem:[%s397 + $0x1c] sm:$0xf]
    %v406 = vld [vmem:[%s397 + $0x20] sm:$0xf]
    %v407 = vld [vmem:[%s397 + $0x24] sm:$0xf]
    %v408 = vld [vmem:[%s397 + $0x28] sm:$0xf]
    %v409 = vld [vmem:[%s397 + $0x2c] sm:$0xf]
    %v410 = vld [vmem:[%s397 + $0x30] sm:$0xf]
    %v411 = vld [vmem:[%s397 + $0x34] sm:$0xf]
    %v412 = vld [vmem:[%s397 + $0x38] sm:$0xf]
    %v413 = vld [vmem:[%s397 + $0x3c] sm:$0xf]
    %s414 = scalar_lea.vmem %s2, 3
    %v415 = vld [vmem:[%s414] sm:$0x1]
    %v417 = vlaneseq
    %v418 = vshrl.u32 %v417, 7
    %v419 = vsub.s32 0, %v418
    %v420 = vrot.slane %v415, %v419
    %v438 = vunpack.c.l.b16 %v398
    %v439 = vunpack.c.l.b16 %v399
    %v440 = vunpack.c.l.b16 %v400
    %v441 = vunpack.c.l.b16 %v401
    %v442 = vunpack.c.l.b16 %v402
    %v443 = vunpack.c.l.b16 %v403
    %v444 = vunpack.c.l.b16 %v404
    %v445 = vunpack.c.l.b16 %v405
    %v446 = vunpack.c.l.b16 %v406
    %v447 = vunpack.c.l.b16 %v407
    %v448 = vunpack.c.l.b16 %v408
    %v449 = vunpack.c.l.b16 %v409
    %v450 = vunpack.c.l.b16 %v410
    %v451 = vunpack.c.l.b16 %v411
    %v452 = vunpack.c.l.b16 %v412
    %v453 = vunpack.c.l.b16 %v413
    %v454 = vpack.c.b16 %v439, %v438
    %v455 = vpack.c.b16 %v441, %v440
    %v456 = vpack.c.b16 %v443, %v442
    %v457 = vpack.c.b16 %v445, %v444
    %v458 = vpack.c.b16 %v447, %v446
    %v459 = vpack.c.b16 %v449, %v448
    %v460 = vpack.c.b16 %v451, %v450
    %v461 = vpack.c.b16 %v453, %v452
    %470 = vmatprep.subr.bf16.mxu0 0
    %471 = vmatpush1.bf16.msra.mxu0 %v454
    %472 = vmatprep.subr.bf16.mxu0 0
    %473 = vmatpush1.bf16.msra.mxu0 %v455
    %474 = vmatprep.subr.bf16.mxu0 0
    %475 = vmatpush1.bf16.msra.mxu0 %v456
    %476 = vmatprep.subr.bf16.mxu0 0
    %477 = vmatpush1.bf16.msra.mxu0 %v457
    %478 = vmatprep.subr.bf16.mxu0 0
    %479 = vmatpush1.bf16.msra.mxu0 %v458
    %480 = vmatprep.subr.bf16.mxu0 0
    %481 = vmatpush1.bf16.msra.mxu0 %v459
    %482 = vmatprep.subr.bf16.mxu0 0
    %483 = vmatpush1.bf16.msra.mxu0 %v460
    %484 = vmatprep.subr.bf16.mxu0 0
    %485 = vmatpush1.bf16.msra.mxu0 %v461
    %486 = vmatprep.subr.bf16.mxu0 0
    %487 = vmatpush1.bf16.msra.mxu0 0
    %488 = vmatprep.subr.bf16.mxu0 0
    %489 = vmatpush1.bf16.msra.mxu0 0
    %490 = vmatprep.subr.bf16.mxu0 0
    %491 = vmatpush1.bf16.msra.mxu0 0
    %492 = vmatprep.subr.bf16.mxu0 0
    %493 = vmatpush1.bf16.msra.mxu0 0
    %494 = vmatprep.subr.bf16.mxu0 0
    %495 = vmatpush1.bf16.msra.mxu0 0
    %496 = vmatprep.subr.bf16.mxu0 0
    %497 = vmatpush1.bf16.msra.mxu0 0
    %498 = vmatprep.subr.bf16.mxu0 0
    %499 = vmatpush1.bf16.msra.mxu0 0
    %500 = vmatprep.subr.bf16.mxu0 0
    %501 = vmatpush1.bf16.msra.mxu0 0
    %502 = vmatprep.mubr.bf16.mxu0 0
    %503 = vmatmul.mubr.bf16.gmra.mrb[0].mxu0 %v396
    %v504 = vpop.f32.mrb[0].mxu0
    %v505 = vadd.f32 %v420, %v504
    %v506 = vpop.f32.mrb[0].mxu0
    %v507 = vpop.f32.mrb[0].mxu0
    %v508 = vpop.f32.mrb[0].mxu0
    %509 = vdwg.mxu0
    %v510 = vmul.f32 %v505, 0.2
    %v511 = vmax.f32 %v505, %v510
    %512 = vst [vmem:[#allocation7] sm:$0xff] %v511
    // Predicated region
    $region22: #{tpu_custom_call.1} parent=1 // pred_check
      _
    $region23: #{tpu_custom_call.1} parent=1 // pred_check_branch
      %514 = sbr.rel (0) target = $region25
    $region24: #{tpu_custom_call.1} parent=1 // pred_region
      %s516 = ssub.s32 128, 128
      %517 = vsyncadd [#allocation4], %s516
      %s519 = sshll.u32 [#allocation7], 4
      %s520 = int_to_ptr.vmem [resolvable:$true] %s519
      %522 = dma.vmem_to_hbm [thread:$0]  %s520, 128, %s3, [#allocation4]
    $region25: #{tpu_custom_call.1} parent=1 // pred_fallthru
      _
    // Predicated region
    $region26: #{tpu_custom_call.1} parent=1 // pred_check
      _
    $region27: #{tpu_custom_call.1} parent=1 // pred_check_branch
      %524 = sbr.rel (0) target = $region29
    $region28: #{tpu_custom_call.1} parent=1 // pred_region
      %525 = dma.done [#allocation4], 128
    $region29: #{tpu_custom_call.1} parent=1 // pred_fallthru
      _
    %526 = vsyncpa [#allocation3], 1
    %527 = vsyncpa [#allocation6], 1
    %528 = vsyncpa [#allocation4], 1

</llo_original>
